<compile_context>
chip_gen: v7x
topology: tpu7x:2x2x1
jax: 0.10.0
libtpu: 0.0.40
codegen_flags: <defaults>
</compile_context>

<pallas_src>
import math

import numpy as np
import jax
import jax.numpy as jnp
from jax import lax
from jax.experimental import pallas as pl
from jax.experimental.pallas import tpu as pltpu


def _round_up(x, m):
    return (x + m - 1) // m * m


# ---------------------------------------------------------------------------
# Kernel 1: KG aggregate
#   entity_agg = scatter_mean(entity_emb[tail] * weight[edge_type-1], head)
#   followed by F.normalize(entity_agg, p=2, dim=1)
# Grid: (entity-row tiles ["parallel"], edge-block steps ["arbitrary"])
# ---------------------------------------------------------------------------
def _kg_agg_kernel(first_blk_ref, nblk_ref,                 # scalar prefetch (SMEM)
                   head_ref, tail_emb_ref, rel_emb_ref, inv_deg_ref,
                   out_ref, acc_ref):
    i = pl.program_id(0)                                    # entity-row tile
    j = pl.program_id(1)                                    # edge-block step
    tile_e, _ = acc_ref.shape
    tile_edge = head_ref.shape[1]

    @pl.when(j == 0)
    def _init():
        acc_ref[...] = jnp.zeros_like(acc_ref)

    # Only accumulate edge blocks that belong to this tile's contiguous
    # (sorted-by-head) range; extra steps re-fetch the same clamped block
    # (no new DMA) and are skipped here.
    @pl.when(j < nblk_ref[i])
    def _accumulate():
        heads = head_ref[...]                               # (1, tile_edge) int32
        local_ids = i * tile_e + lax.broadcasted_iota(
            jnp.int32, (tile_e, tile_edge), 0)
        onehot = (heads == local_ids).astype(jnp.bfloat16)  # exact 0/1 in bf16
        neigh = (tail_emb_ref[...] * rel_emb_ref[...]).astype(jnp.bfloat16)
        acc_ref[...] += jnp.dot(onehot, neigh,
                                preferred_element_type=jnp.float32)

    @pl.when(j == pl.num_programs(1) - 1)
    def _finalize():
        mean = acc_ref[...] * inv_deg_ref[...]              # scatter_mean divide
        ssq = jnp.sum(mean * mean, axis=1, keepdims=True)
        out_ref[...] = (mean * lax.rsqrt(jnp.maximum(ssq, 1e-24))
                        ).astype(out_ref.dtype)             # F.normalize (rsqrt/EUP)


def _kg_aggregate(first_blk, nblk, head_lanes, tail_emb, rel_emb, inv_deg,
                  *, tile_e, tile_edge, max_blocks):
    e_pad = inv_deg.shape[0]
    c_pad = tail_emb.shape[1]
    n_tiles = e_pad // tile_e

    def edge_block(i, j, fb_ref, nb_ref):
        # Clamp to this tile's last edge block; stays within the data blocks.
        return fb_ref[i] + jnp.minimum(j, nb_ref[i] - 1)

    neigh_spec = pl.BlockSpec(
        (tile_edge, c_pad), lambda i, j, fb, nb: (edge_block(i, j, fb, nb), 0))

    return pl.pallas_call(
        _kg_agg_kernel,
        out_shape=jax.ShapeDtypeStruct((e_pad, c_pad), jnp.float32),
        grid_spec=pltpu.PrefetchScalarGridSpec(
            num_scalar_prefetch=2,
            grid=(n_tiles, max_blocks),
            in_specs=[
                # sorted head ids, lane-major (1, ne_pad)
                pl.BlockSpec((1, tile_edge),
                             lambda i, j, fb, nb: (0, edge_block(i, j, fb, nb))),
                neigh_spec,      # entity_emb[tail]  (gathered per hop, f32)
                neigh_spec,      # weight[edge_type-1] (hop-invariant, bf16)
                pl.BlockSpec((tile_e, 1), lambda i, j, fb, nb: (i, 0)),
            ],
            out_specs=pl.BlockSpec((tile_e, c_pad), lambda i, j, fb, nb: (i, 0)),
            scratch_shapes=[pltpu.VMEM((tile_e, c_pad), jnp.float32)]),
        compiler_params=pltpu.CompilerParams(
            dimension_semantics=("parallel", "arbitrary"),
            vmem_limit_bytes=32 * 1024 * 1024),
    )(first_blk, nblk, head_lanes, tail_emb, rel_emb, inv_deg)


# ---------------------------------------------------------------------------
# Kernel 2: user aggregate  user_agg = interact_mat @ entity_emb  (+ normalize)
# Grid: (user-row tiles ["parallel"], entity K tiles ["arbitrary"])
# ---------------------------------------------------------------------------
def _user_agg_kernel(im_ref, ent_ref, out_ref, acc_ref):
    k = pl.program_id(1)

    @pl.when(k == 0)
    def _init():
        acc_ref[...] = jnp.zeros_like(acc_ref)

    acc_ref[...] += jnp.dot(im_ref[...],                      # bf16 (pre-cast)
                            ent_ref[...].astype(jnp.bfloat16),
                            preferred_element_type=jnp.float32)

    @pl.when(k == pl.num_programs(1) - 1)
    def _finalize():
        x = acc_ref[...]
        ssq = jnp.sum(x * x, axis=1, keepdims=True)
        out_ref[...] = (x * lax.rsqrt(jnp.maximum(ssq, 1e-24))
                        ).astype(out_ref.dtype)


def _user_aggregate(interact_mat_bf16, ent, *, tile_u, tile_k):
    u_pad, e_pad = interact_mat_bf16.shape
    c_pad = ent.shape[1]
    return pl.pallas_call(
        _user_agg_kernel,
        out_shape=jax.ShapeDtypeStruct((u_pad, c_pad), jnp.float32),
        grid=(u_pad // tile_u, e_pad // tile_k),
        in_specs=[pl.BlockSpec((tile_u, tile_k), lambda i, k: (i, k)),
                  pl.BlockSpec((tile_k, c_pad), lambda i, k: (k, 0))],
        out_specs=pl.BlockSpec((tile_u, c_pad), lambda i, k: (i, 0)),
        scratch_shapes=[pltpu.VMEM((tile_u, c_pad), jnp.float32)],
        compiler_params=pltpu.CompilerParams(
            dimension_semantics=("parallel", "arbitrary"),
            vmem_limit_bytes=32 * 1024 * 1024),
    )(interact_mat_bf16, ent)


# ---------------------------------------------------------------------------
# Hop-invariant edge-side preprocessing (host side, once per graph).
# ---------------------------------------------------------------------------
def _preprocess_edges(edge_index, edge_type, weight, *, e_pad, c_pad,
                      tile_e, tile_edge):
    head = np.asarray(edge_index[0]).astype(np.int64)
    tail = np.asarray(edge_index[1]).astype(np.int64)
    rel = np.asarray(edge_type).astype(np.int64) - 1
    w = np.asarray(weight).astype(np.float32)
    ne = int(head.shape[0])
    C = w.shape[1]

    # Sort edges by head -> every entity-row tile owns a contiguous edge range.
    perm = np.argsort(head, kind="stable")
    head_s, tail_s, rel_s = head[perm], tail[perm], rel[perm]

    ne_pad = _round_up(max(ne, 1), tile_edge)
    n_data_blocks = ne_pad // tile_edge

    head_pad = np.full((ne_pad,), -1, np.int32)     # -1 never matches a row id
    head_pad[:ne] = head_s
    tail_pad = np.zeros((ne_pad,), np.int32)        # padded rows gather row 0,
    tail_pad[:ne] = tail_s                          # masked out by head == -1

    rel_emb = np.zeros((ne_pad, c_pad), np.float32)  # weight[edge_type - 1]
    rel_emb[:ne, :C] = w[rel_s]

    # scatter_mean denominator: in-degree (as head) of every entity.
    deg = np.bincount(head_s, minlength=e_pad).astype(np.float32)
    inv_deg = (1.0 / np.maximum(deg, 1.0)).reshape(e_pad, 1)

    # Per entity tile: first edge block and number of edge blocks to visit.
    cum = np.zeros((e_pad + 1,), np.int64)
    cum[1:] = np.cumsum(np.bincount(head_s, minlength=e_pad))
    n_tiles = e_pad // tile_e
    starts = cum[np.arange(n_tiles) * tile_e]
    ends = cum[(np.arange(n_tiles) + 1) * tile_e]
    nonempty = ends > starts
    first_blk = np.minimum(starts // tile_edge, n_data_blocks - 1)
    last_blk = np.where(nonempty, (np.maximum(ends, 1) - 1) // tile_edge, first_blk)
    nblk = np.where(nonempty, last_blk - first_blk + 1, 1)
    max_blocks = int(nblk.max()) if n_tiles else 1

    return dict(
        head=jnp.asarray(head_pad.reshape(1, ne_pad)),        # lane-major ids
        tail=jnp.asarray(tail_pad),
        rel_emb=jnp.asarray(rel_emb, dtype=jnp.bfloat16),      # hop-invariant
        inv_deg=jnp.asarray(inv_deg),
        first_blk=jnp.asarray(first_blk.astype(np.int32)),
        nblk=jnp.asarray(nblk.astype(np.int32)),
        max_blocks=max_blocks,
    )


# ---------------------------------------------------------------------------
# HGCN.forward: n_hops of (KG agg, user agg) -> normalize -> residual sum.
# ---------------------------------------------------------------------------
def hgcn_forward(user_emb, entity_emb, edge_index, edge_type, interact_mat,
                 weight, n_hops, mess_dropout=False,
                 tile_e=128, tile_edge=256, tile_u=128, tile_k=128):
    U, C = user_emb.shape
    E = entity_emb.shape[0]

    # Tile sizes respecting the (8, 128) layout rules and the actual extents.
    tile_e = min(_round_up(tile_e, 8), _round_up(E, 8))
    tile_k = min(_round_up(tile_k, 128), _round_up(E, 128))
    tile_u = min(_round_up(tile_u, 8), _round_up(U, 8))
    tile_edge = _round_up(tile_edge, 128)

    c_pad = _round_up(C, 128)                       # lane-dense channel dim
    e_pad = _round_up(E, math.lcm(tile_e, tile_k))
    u_pad = _round_up(U, tile_u)

    prep = _preprocess_edges(edge_index, edge_type, weight,
                             e_pad=e_pad, c_pad=c_pad,
                             tile_e=tile_e, tile_edge=tile_edge)

    ent = jnp.zeros((e_pad, c_pad), jnp.float32).at[:E, :C].set(
        entity_emb.astype(jnp.float32))
    user_res = jnp.zeros((u_pad, c_pad), jnp.float32).at[:U, :C].set(
        user_emb.astype(jnp.float32))
    entity_res = ent

    # Hop-invariant: densified interaction matrix, padded and cast to bf16 once.
    # TODO(synk): at production scale keep interact_mat sparse (CSR) and turn the
    # user aggregate into an SpMM with DMA-gathered entity rows.
    im_bf16 = jnp.zeros((u_pad, e_pad), jnp.float32).at[:U, :E].set(
        interact_mat.astype(jnp.float32)).astype(jnp.bfloat16)

    # TODO(synk): mess_dropout (nn.Dropout) is stochastic; only the deterministic
    # mess_dropout=False path is implemented.
    # TODO(synk): hops are separate pallas_calls because each hop needs the full
    # (re-gathered) entity embedding of the previous hop; interact_mat / edge
    # data / rel_emb are nevertheless only prepared (and cast) once.
    for _ in range(n_hops):
        # Direct O(ne*C) row gather of the current entity embeddings (XLA gather).
        tail_emb = jnp.take(ent, prep["tail"], axis=0)

        ent_n = _kg_aggregate(prep["first_blk"], prep["nblk"], prep["head"],
                              tail_emb, prep["rel_emb"], prep["inv_deg"],
                              tile_e=tile_e, tile_edge=tile_edge,
                              max_blocks=prep["max_blocks"])
        usr_n = _user_aggregate(im_bf16, ent, tile_u=tile_u, tile_k=tile_k)

        entity_res = entity_res + ent_n
        user_res = user_res + usr_n
        ent = ent_n

    return entity_res[:E, :C], user_res[:U, :C]


# ---------------------------------------------------------------------------
# Pure-JAX reference (mirrors the PyTorch semantics) for correctness checking.
# ---------------------------------------------------------------------------
def _ref_forward(user_emb, entity_emb, edge_index, edge_type, interact_mat,
                 weight, n_hops):
    head = edge_index[0]
    tail = edge_index[1]
    rel = edge_type - 1
    E = entity_emb.shape[0]

    def l2norm(x):
        n = jnp.linalg.norm(x, axis=1, keepdims=True)
        return x / jnp.maximum(n, 1e-12)

    entity_res, user_res, ent = entity_emb, user_emb, entity_emb
    for _ in range(n_hops):
        neigh = ent[tail] * weight[rel]
        sums = jnp.zeros((E, ent.shape[1]), jnp.float32).at[head].add(neigh)
        counts = jnp.zeros((E,), jnp.float32).at[head].add(1.0)
        entity_agg = sums / jnp.maximum(counts, 1.0)[:, None]
        user_agg = interact_mat @ ent
        ent_n, usr_n = l2norm(entity_agg), l2norm(user_agg)
        entity_res = entity_res + ent_n
        user_res = user_res + usr_n
        ent = ent_n
    return entity_res, user_res


if __name__ == "__main__":
    key = jax.random.PRNGKey(0)
    channel = 32
    n_hops = 2
    n_users = 16
    n_entities = 200
    n_relations = 5           # weight has n_relations - 1 = 4 rows
    n_edges = 600

    k = jax.random.split(key, 7)
    user_emb = jax.random.normal(k[0], (n_users, channel), jnp.float32)
    entity_emb = jax.random.normal(k[1], (n_entities, channel), jnp.float32)
    head = jax.random.randint(k[2], (n_edges,), 0, n_entities, jnp.int32)
    tail = jax.random.randint(k[3], (n_edges,), 0, n_entities, jnp.int32)
    edge_index = jnp.stack([head, tail], axis=0)                 # [2, n_edges]
    edge_type = jax.random.randint(k[4], (n_edges,), 1, n_relations, jnp.int32)

    # Deterministic xavier_uniform-style init for weight [n_relations-1, channel]
    bound = (6.0 / ((n_relations - 1) + channel)) ** 0.5
    weight = jax.random.uniform(k[5], (n_relations - 1, channel),
                                jnp.float32, -bound, bound)

    # Densified user-entity interaction matrix [n_users, n_entities]
    interact_mat = jax.random.bernoulli(k[6], 0.3,
                                        (n_users, n_entities)).astype(jnp.float32)

    entity_out, user_out = hgcn_forward(
        user_emb, entity_emb, edge_index, edge_type, interact_mat, weight,
        n_hops, mess_dropout=False,
        tile_e=8, tile_edge=128, tile_u=128, tile_k=128)
    jax.block_until_ready((entity_out, user_out))

    ref_ent, ref_usr = _ref_forward(user_emb, entity_emb, edge_index,
                                    edge_type, interact_mat, weight, n_hops)

    # bf16 MXU operands -> loosened tolerance vs the f32 reference.
    assert entity_out.shape == ref_ent.shape and user_out.shape == ref_usr.shape
    assert jnp.allclose(entity_out, ref_ent, atol=2e-2, rtol=2e-2), \
        float(jnp.max(jnp.abs(entity_out - ref_ent)))
    assert jnp.allclose(user_out, ref_usr, atol=2e-2, rtol=2e-2), \
        float(jnp.max(jnp.abs(user_out - ref_usr)))

    print("KERNEL_OK")
</pallas_src>

<mosaic_0001>
module attributes {stable_mosaic.version = 11 : i64} {
  func.func @_kg_agg_kernel(%arg0: i32, %arg1: i32, %arg2: memref<32xi32, #tpu.memory_space<smem>>, %arg3: memref<32xi32, #tpu.memory_space<smem>>, %arg4: memref<1x128xi32, #tpu.memory_space<vmem>>, %arg5: memref<128x128xf32, #tpu.memory_space<vmem>>, %arg6: memref<128x128xbf16, #tpu.memory_space<vmem>>, %arg7: memref<8x1xf32, #tpu.memory_space<vmem>>, %arg8: memref<8x128xf32, #tpu.memory_space<vmem>>, %arg9: memref<8x128xf32, #tpu.memory_space<vmem>>) attributes {dimension_semantics = [#tpu.dimension_semantics<parallel>, #tpu.dimension_semantics<arbitrary>], iteration_bounds = array<i64: 32, 2>, scalar_prefetch = 2 : i64, scratch_operands = 1 : i64, tpu.core_type = #tpu.core_type<tc>, window_params = [{transform_indices = @transform_0, window_bounds = array<i64: 1, 128>}, {transform_indices = @transform_1, window_bounds = array<i64: 128, 128>}, {transform_indices = @transform_2, window_bounds = array<i64: 128, 128>}, {transform_indices = @transform_3, window_bounds = array<i64: 8, 1>}, {transform_indices = @transform_4, window_bounds = array<i64: 8, 128>}]} {
    %c0_i32 = arith.constant 0 : i32
    %0 = arith.cmpi eq, %arg1, %c0_i32 : i32
    %1 = arith.extui %0 : i1 to i32
    %c0_i32_0 = arith.constant 0 : i32
    %2 = arith.cmpi ne, %1, %c0_i32_0 : i32
    scf.if %2 {
      %cst = arith.constant 0.000000e+00 : f32
      %11 = vector.broadcast %cst : f32 to vector<8x128xf32>
      %c0 = arith.constant 0 : index
      %c0_3 = arith.constant 0 : index
      %12 = vector.load %arg9[%c0, %c0_3] : memref<8x128xf32, #tpu.memory_space<vmem>>, vector<8x128xf32>
      tpu.vector_store %arg9[%c0, %c0_3], %11 {strides = array<i32>} : memref<8x128xf32, #tpu.memory_space<vmem>>, vector<8x128xf32>,
    } else {
    }
    %3 = arith.index_cast %arg0 : i32 to index
    %4 = memref.load %arg3[%3] : memref<32xi32, #tpu.memory_space<smem>>
    %5 = arith.cmpi slt, %arg1, %4 : i32
    %6 = arith.extui %5 : i1 to i32
    %c0_i32_1 = arith.constant 0 : i32
    %7 = arith.cmpi ne, %6, %c0_i32_1 : i32
    scf.if %7 {
      %c0 = arith.constant 0 : index
      %c0_3 = arith.constant 0 : index
      %11 = vector.load %arg4[%c0, %c0_3] : memref<1x128xi32, #tpu.memory_space<vmem>>, vector<1x128xi32>
      %c8_i32 = arith.constant 8 : i32
      %12 = arith.muli %arg0, %c8_i32 : i32
      %13 = tpu.iota {dimensions = array<i32: 0>} : vector<8x128xi32>
      %14 = vector.broadcast %12 : i32 to vector<8x128xi32>
      %15 = arith.addi %14, %13 : vector<8x128xi32>
      %16 = vector.broadcast %11 : vector<1x128xi32> to vector<8x128xi32>
      %17 = arith.cmpi eq, %16, %15 : vector<8x128xi32>
      %18 = arith.extui %17 : vector<8x128xi1> to vector<8x128xi32>
      %19 = arith.sitofp %18 : vector<8x128xi32> to vector<8x128xf32>
      %20 = arith.truncf %19 : vector<8x128xf32> to vector<8x128xbf16>
      %c0_4 = arith.constant 0 : index
      %c0_5 = arith.constant 0 : index
      %21 = vector.load %arg5[%c0_4, %c0_5] : memref<128x128xf32, #tpu.memory_space<vmem>>, vector<128x128xf32>
      %c0_6 = arith.constant 0 : index
      %c0_7 = arith.constant 0 : index
      %22 = vector.load %arg6[%c0_6, %c0_7] : memref<128x128xbf16, #tpu.memory_space<vmem>>, vector<128x128xbf16>
      %23 = arith.extf %22 : vector<128x128xbf16> to vector<128x128xf32>
      %24 = arith.mulf %21, %23 : vector<128x128xf32>
      %25 = arith.truncf %24 : vector<128x128xf32> to vector<128x128xbf16>
      %c0_8 = arith.constant 0 : index
      %c0_9 = arith.constant 0 : index
      %26 = vector.load %arg9[%c0_8, %c0_9] : memref<8x128xf32, #tpu.memory_space<vmem>>, vector<8x128xf32>
      %cst = arith.constant dense<0.000000e+00> : vector<8x128xf32>
      %27 = tpu.matmul %20, %25, %cst {dimension_numbers = #tpu.dot_dimension_numbers<[1], [0], [0], [1], [0, 0, 1, 1], [], []>} : vector<8x128xbf16>, vector<128x128xbf16>, vector<8x128xf32> -> vector<8x128xf32>
      %28 = arith.addf %26, %27 : vector<8x128xf32>
      %c0_10 = arith.constant 0 : index
      %c0_11 = arith.constant 0 : index
      %29 = vector.load %arg9[%c0_10, %c0_11] : memref<8x128xf32, #tpu.memory_space<vmem>>, vector<8x128xf32>
      tpu.vector_store %arg9[%c0_10, %c0_11], %28 {strides = array<i32>} : memref<8x128xf32, #tpu.memory_space<vmem>>, vector<8x128xf32>,
    } else {
    }
    %c1_i32 = arith.constant 1 : i32
    %8 = arith.cmpi eq, %arg1, %c1_i32 : i32
    %9 = arith.extui %8 : i1 to i32
    %c0_i32_2 = arith.constant 0 : i32
    %10 = arith.cmpi ne, %9, %c0_i32_2 : i32
    scf.if %10 {
      %c0 = arith.constant 0 : index
      %c0_3 = arith.constant 0 : index
      %11 = vector.load %arg9[%c0, %c0_3] : memref<8x128xf32, #tpu.memory_space<vmem>>, vector<8x128xf32>
      %c0_4 = arith.constant 0 : index
      %c0_5 = arith.constant 0 : index
      %12 = vector.load %arg7[%c0_4, %c0_5] : memref<8x1xf32, #tpu.memory_space<vmem>>, vector<8x1xf32>
      %13 = vector.broadcast %12 : vector<8x1xf32> to vector<8x128xf32>
      %14 = arith.mulf %11, %13 : vector<8x128xf32>
      %15 = arith.mulf %14, %14 : vector<8x128xf32>
      %cst = arith.constant dense<0.000000e+00> : vector<8xf32>
      %16 = vector.multi_reduction <add>, %15, %cst [1] : vector<8x128xf32> to vector<8xf32>
      %17 = vector.shape_cast %16 : vector<8xf32> to vector<8x1xf32>
      %cst_6 = arith.constant 1.000000e-24 : f32
      %18 = vector.broadcast %cst_6 : f32 to vector<8x1xf32>
      %19 = arith.maximumf %17, %18 : vector<8x1xf32>
      %20 = math.rsqrt %19 : vector<8x1xf32>
      %21 = vector.broadcast %20 : vector<8x1xf32> to vector<8x128xf32>
      %22 = arith.mulf %14, %21 : vector<8x128xf32>
      %c0_7 = arith.constant 0 : index
      %c0_8 = arith.constant 0 : index
      %23 = vector.load %arg8[%c0_7, %c0_8] : memref<8x128xf32, #tpu.memory_space<vmem>>, vector<8x128xf32>
      tpu.vector_store %arg8[%c0_7, %c0_8], %22 {strides = array<i32>} : memref<8x128xf32, #tpu.memory_space<vmem>>, vector<8x128xf32>,
    } else {
    }
    return
  }
  func.func @transform_0(%arg0: i32, %arg1: i32, %arg2: memref<32xi32, #tpu.memory_space<smem>>, %arg3: memref<32xi32, #tpu.memory_space<smem>>) -> (i32, i32) {
    %0 = arith.index_cast %arg0 : i32 to index
    %1 = memref.load %arg2[%0] : memref<32xi32, #tpu.memory_space<smem>>
    %2 = arith.index_cast %arg0 : i32 to index
    %3 = memref.load %arg3[%2] : memref<32xi32, #tpu.memory_space<smem>>
    %c1_i32 = arith.constant 1 : i32
    %4 = arith.subi %3, %c1_i32 : i32
    %5 = arith.minsi %arg1, %4 : i32
    %6 = arith.addi %1, %5 : i32
    %c0_i32 = arith.constant 0 : i32
    %c0_i32_0 = arith.constant 0 : i32
    return %c0_i32, %6 : i32, i32
  }
  func.func @transform_1(%arg0: i32, %arg1: i32, %arg2: memref<32xi32, #tpu.memory_space<smem>>, %arg3: memref<32xi32, #tpu.memory_space<smem>>) -> (i32, i32) {
    %0 = arith.index_cast %arg0 : i32 to index
    %1 = memref.load %arg2[%0] : memref<32xi32, #tpu.memory_space<smem>>
    %2 = arith.index_cast %arg0 : i32 to index
    %3 = memref.load %arg3[%2] : memref<32xi32, #tpu.memory_space<smem>>
    %c1_i32 = arith.constant 1 : i32
    %4 = arith.subi %3, %c1_i32 : i32
    %5 = arith.minsi %arg1, %4 : i32
    %6 = arith.addi %1, %5 : i32
    %c0_i32 = arith.constant 0 : i32
    %c0_i32_0 = arith.constant 0 : i32
    return %6, %c0_i32 : i32, i32
  }
  func.func @transform_2(%arg0: i32, %arg1: i32, %arg2: memref<32xi32, #tpu.memory_space<smem>>, %arg3: memref<32xi32, #tpu.memory_space<smem>>) -> (i32, i32) {
    %0 = arith.index_cast %arg0 : i32 to index
    %1 = memref.load %arg2[%0] : memref<32xi32, #tpu.memory_space<smem>>
    %2 = arith.index_cast %arg0 : i32 to index
    %3 = memref.load %arg3[%2] : memref<32xi32, #tpu.memory_space<smem>>
    %c1_i32 = arith.constant 1 : i32
    %4 = arith.subi %3, %c1_i32 : i32
    %5 = arith.minsi %arg1, %4 : i32
    %6 = arith.addi %1, %5 : i32
    %c0_i32 = arith.constant 0 : i32
    %c0_i32_0 = arith.constant 0 : i32
    return %6, %c0_i32 : i32, i32
  }
  func.func @transform_3(%arg0: i32, %arg1: i32, %arg2: memref<32xi32, #tpu.memory_space<smem>>, %arg3: memref<32xi32, #tpu.memory_space<smem>>) -> (i32, i32) {
    %c0_i32 = arith.constant 0 : i32
    %c0_i32_0 = arith.constant 0 : i32
    return %arg0, %c0_i32 : i32, i32
  }
  func.func @transform_4(%arg0: i32, %arg1: i32, %arg2: memref<32xi32, #tpu.memory_space<smem>>, %arg3: memref<32xi32, #tpu.memory_space<smem>>) -> (i32, i32) {
    %c0_i32 = arith.constant 0 : i32
    %c0_i32_0 = arith.constant 0 : i32
    return %arg0, %c0_i32 : i32, i32
  }
}

</mosaic_0001>

<llo_original>
// kernel: tpu_custom_call.1
$region0: #{tpu_custom_call.1}
  #allocation0 [shape = 'u32[]', space=smem, size = 0x4, offset = 0x4, fixed_abs, tag = 'smem constant byte address 0x4 - core index']
  #allocation1 [shape = 'u32[144,128]{1,0:T(1,128)}', space=vmem, size = 0x12000, scoped, tag = 'internal scratch']
  #allocation2 [shape = 'f32[8,128]{1,0:T(8,128)}', space=vmem, size = 0x1000, scoped, tag = 'scratch operand']
  #allocation3 [shape = 's32[1]{0}', space=sflag, size = 0x4, scoped, tag = 'scoped memory for tpu_custom_call.1']
  #allocation4 [shape = 'u8[512]{0}', space=smem, size = 0x200, scoped, tag = 'prefetched SMEM operand 0']
  #allocation5 [shape = 'u8[512]{0}', space=smem, size = 0x200, scoped, tag = 'prefetched SMEM operand 1']
  %s0 = inlined_call_operand.vmem [shape: s32[32], index: 0, kind: input, shape index: {}]
  %s1 = inlined_call_operand.vmem [shape: s32[32], index: 1, kind: input, shape index: {}]
  %s2 = inlined_call_operand.vmem [shape: s32[1,640], index: 2, kind: input, shape index: {}]
  %s3 = inlined_call_operand.hbm [shape: f32[640,128], index: 3, kind: input, shape index: {}]
  %s4 = inlined_call_operand.hbm [shape: bf16[640,128], index: 4, kind: input, shape index: {}]
  %s5 = inlined_call_operand.vmem [shape: f32[256,1], index: 5, kind: input, shape index: {}]
  %s6 = inlined_call_operand.hbm [shape: f32[256,128], index: 6, kind: output, shape index: {}]
  %s7 = sld [smem:[#allocation0]]
  $region69: #{tpu_custom_call.1} parent=0
    _
  %s9 = ssub.s32 1, %s7
  %s10 = scalar_select 0, %s9, %s7
  %s11 = sshll.u32 %s0, 4
  %s12 = int_to_ptr.vmem [resolvable:$true] %s11
  %14 = dma.vmem_to_smem %s12, 16, [#allocation4], [#allocation3]
  %s15 = sshll.u32 %s1, 4
  %s16 = int_to_ptr.vmem [resolvable:$true] %s15
  %18 = dma.vmem_to_smem %s16, 16, [#allocation5], [#allocation3]
  %19 = dma.done [#allocation3], 32
  %20 = sfence
  $region1: #{tpu_custom_call.1} parent=0
    #allocation6 [shape = 'u8[131072]{0}', space=vmem, size = 0x20000, scoped, tag = 'input window, operand 3']
    #allocation7 [shape = 's32[2]{0}', space=sflag, size = 0x8, scoped, tag = 'scoped memory for tpu_custom_call.1']
    #allocation8 [shape = 's32[2]{0}', space=sflag, size = 0x8, scoped, tag = 'scoped memory for tpu_custom_call.1']
    #allocation9 [shape = 'u8[65536]{0}', space=vmem, size = 0x10000, scoped, tag = 'input window, operand 4']
    #allocation10 [shape = 's32[2]{0}', space=sflag, size = 0x8, scoped, tag = 'scoped memory for tpu_custom_call.1']
    #allocation11 [shape = 'u8[8192]{0}', space=vmem, size = 0x2000, scoped, tag = 'output window, operand 0']
    %21 = vsyncpa [#allocation7], 0
    %s22 = scalar_lea.sflag [#allocation7], 1
    %23 = vsyncpa %s22, 0
    %24 = vsyncpa [#allocation10], 0
    %s25 = scalar_lea.sflag [#allocation10], 1
    %26 = vsyncpa %s25, 0
    %27 = vsyncpa [#allocation8], 0
    %s28 = scalar_lea.sflag [#allocation8], 1
    %29 = vsyncpa %s28, 0
    loop: start=0, step=1, limit=66
    $region2: #{tpu_custom_call.1} parent=1 // loop_pre_header
      _
    $region3: #{tpu_custom_call.1} parent=1 // loop_header
      %s31 = sphi 0, %s35
      %p32 = scmp.ge.s32.totalorder %s31, 66
      %s38 = sphi 0, %s50
      %s39 = sphi 0, %s46
      %s40 = sphi 0, %s38
      %s41 = sphi 0, %s39
      %s42 = sphi 0, %s40
      %s43 = sphi 0, %s41
      %s65 = sphi 0, %s67
      %s68 = sphi 0, %s65
      %s69 = sphi 0, %s68
      %s85 = sphi 0, %s69
      %s103 = sphi 0, %s105
      %s106 = sphi 0, %s103
      %s107 = sphi 0, %s106
      %s123 = sphi 0, %s107
      %s141 = sphi 0, %s143
      %s144 = sphi 0, %s141
      %s145 = sphi 0, %s144
      %s161 = sphi 0, %s145
      %s167 = sphi 0, %s169
      %s170 = sphi 0, %s167
      %s171 = sphi 0, %s170
      %s187 = sphi 0, %s171
      %s193 = sphi 0, %s195
      %s196 = sphi 0, %s193
      %s197 = sphi 0, %s196
      %s213 = sphi 0, %s197
    $region4: #{tpu_custom_call.1} parent=1 // loop_header_branch
      %34 = sbr.rel (%p32) target = $region8
    $region5: #{tpu_custom_call.1} parent=1 // loop_body
      %s36 = ssub.s32 %s31, 1
      %s37 = ssub.s32 %s31, 2
      %s44 = sadd.s32 1, %s39
      %p45 = scmp.ge.s32.totalorder %s44, 2
      %s46 = scalar_select %p45, 0, %s44
      %s47 = sadd.s32 1, %s38
      %s48 = scalar_select %p45, %s47, %s38
      %p49 = scmp.ge.s32.totalorder %s48, 32
      %s50 = scalar_select %p49, 0, %s48
      %s51 = sld [smem:[#allocation4 + %s38]]
      %s52 = sld [smem:[#allocation5 + %s38]]
      %s53 = ssub.s32 %s52, 1
      %p54 = scmp.lt.s32.totalorder %s39, %s53
      %s55 = scalar_select %p54, %s39, %s53
      %s56 = sadd.s32 %s51, %s55
      %s57 = sld [smem:[#allocation4 + %s50]]
      %s58 = sld [smem:[#allocation5 + %s50]]
      %s59 = ssub.s32 %s58, 1
      %p60 = scmp.lt.s32.totalorder %s46, %s59
      %s61 = scalar_select %p60, %s46, %s59
      %s62 = sadd.s32 %s57, %s61
      %s63 = ssub.s32 %s56, %s62
      %p64 = scmp.eq.s32.totalorder %s63, 0
      %s66 = sadd.s32 %s65, 1
      %s67 = scalar_select %p64, %s65, %s66
      %p70 = pneg %p64
      %p71 = scmp.eq.s32.totalorder %s31, 63
      %p72 = por %p70, %p71
      %p73 = scmp.ne.s32.totalorder %s65, %s68
      %p74 = scmp.eq.s32.totalorder %s31, 0
      %p75 = por %p73, %p74
      %p76 = scmp.ne.s32.totalorder %s65, %s68
      %p77 = scmp.eq.s32.totalorder %s36, 63
      %p78 = por %p76, %p77
      %p79 = scmp.ne.s32.totalorder %s68, %s69
      %p80 = scmp.eq.s32.totalorder %s36, 0
      %p81 = por %p79, %p80
      %p82 = scmp.ne.s32.totalorder %s68, %s69
      %p83 = scmp.eq.s32.totalorder %s37, 63
      %p84 = por %p82, %p83
      %p86 = scmp.ne.s32.totalorder %s69, %s85
      %p87 = scmp.eq.s32.totalorder %s37, 0
      %p88 = por %p86, %p87
      %s89 = sld [smem:[#allocation4 + %s38]]
      %s90 = sld [smem:[#allocation5 + %s38]]
      %s91 = ssub.s32 %s90, 1
      %p92 = scmp.lt.s32.totalorder %s39, %s91
      %s93 = scalar_select %p92, %s39, %s91
      %s94 = sadd.s32 %s89, %s93
      %s95 = sld [smem:[#allocation4 + %s50]]
      %s96 = sld [smem:[#allocation5 + %s50]]
      %s97 = ssub.s32 %s96, 1
      %p98 = scmp.lt.s32.totalorder %s46, %s97
      %s99 = scalar_select %p98, %s46, %s97
      %s100 = sadd.s32 %s95, %s99
      %s101 = ssub.s32 %s94, %s100
      %p102 = scmp.eq.s32.totalorder %s101, 0
      %s104 = sadd.s32 %s103, 1
      %s105 = scalar_select %p102, %s103, %s104
      %p108 = pneg %p102
      %p109 = scmp.eq.s32.totalorder %s31, 63
      %p110 = por %p108, %p109
      %p111 = scmp.ne.s32.totalorder %s103, %s106
      %p112 = scmp.eq.s32.totalorder %s31, 0
      %p113 = por %p111, %p112
      %p114 = scmp.ne.s32.totalorder %s103, %s106
      %p115 = scmp.eq.s32.totalorder %s36, 63
      %p116 = por %p114, %p115
      %p117 = scmp.ne.s32.totalorder %s106, %s107
      %p118 = scmp.eq.s32.totalorder %s36, 0
      %p119 = por %p117, %p118
      %p120 = scmp.ne.s32.totalorder %s106, %s107
      %p121 = scmp.eq.s32.totalorder %s37, 63
      %p122 = por %p120, %p121
      %p124 = scmp.ne.s32.totalorder %s107, %s123
      %p125 = scmp.eq.s32.totalorder %s37, 0
      %p126 = por %p124, %p125
      %s127 = sld [smem:[#allocation4 + %s38]]
      %s128 = sld [smem:[#allocation5 + %s38]]
      %s129 = ssub.s32 %s128, 1
      %p130 = scmp.lt.s32.totalorder %s39, %s129
      %s131 = scalar_select %p130, %s39, %s129
      %s132 = sadd.s32 %s127, %s131
      %s133 = sld [smem:[#allocation4 + %s50]]
      %s134 = sld [smem:[#allocation5 + %s50]]
      %s135 = ssub.s32 %s134, 1
      %p136 = scmp.lt.s32.totalorder %s46, %s135
      %s137 = scalar_select %p136, %s46, %s135
      %s138 = sadd.s32 %s133, %s137
      %s139 = ssub.s32 %s132, %s138
      %p140 = scmp.eq.s32.totalorder %s139, 0
      %s142 = sadd.s32 %s141, 1
      %s143 = scalar_select %p140, %s141, %s142
      %p146 = pneg %p140
      %p147 = scmp.eq.s32.totalorder %s31, 63
      %p148 = por %p146, %p147
      %p149 = scmp.ne.s32.totalorder %s141, %s144
      %p150 = scmp.eq.s32.totalorder %s31, 0
      %p151 = por %p149, %p150
      %p152 = scmp.ne.s32.totalorder %s141, %s144
      %p153 = scmp.eq.s32.totalorder %s36, 63
      %p154 = por %p152, %p153
      %p155 = scmp.ne.s32.totalorder %s144, %s145
      %p156 = scmp.eq.s32.totalorder %s36, 0
      %p157 = por %p155, %p156
      %p158 = scmp.ne.s32.totalorder %s144, %s145
      %p159 = scmp.eq.s32.totalorder %s37, 63
      %p160 = por %p158, %p159
      %p162 = scmp.ne.s32.totalorder %s145, %s161
      %p163 = scmp.eq.s32.totalorder %s37, 0
      %p164 = por %p162, %p163
      %s165 = ssub.s32 %s38, %s50
      %p166 = scmp.eq.s32.totalorder %s165, 0
      %s168 = sadd.s32 %s167, 1
      %s169 = scalar_select %p166, %s167, %s168
      %p172 = pneg %p166
      %p173 = scmp.eq.s32.totalorder %s31, 63
      %p174 = por %p172, %p173
      %p175 = scmp.ne.s32.totalorder %s167, %s170
      %p176 = scmp.eq.s32.totalorder %s31, 0
      %p177 = por %p175, %p176
      %p178 = scmp.ne.s32.totalorder %s167, %s170
      %p179 = scmp.eq.s32.totalorder %s36, 63
      %p180 = por %p178, %p179
      %p181 = scmp.ne.s32.totalorder %s170, %s171
      %p182 = scmp.eq.s32.totalorder %s36, 0
      %p183 = por %p181, %p182
      %p184 = scmp.ne.s32.totalorder %s170, %s171
      %p185 = scmp.eq.s32.totalorder %s37, 63
      %p186 = por %p184, %p185
      %p188 = scmp.ne.s32.totalorder %s171, %s187
      %p189 = scmp.eq.s32.totalorder %s37, 0
      %p190 = por %p188, %p189
      %s191 = ssub.s32 %s38, %s50
      %p192 = scmp.eq.s32.totalorder %s191, 0
      %s194 = sadd.s32 %s193, 1
      %s195 = scalar_select %p192, %s193, %s194
      %p198 = pneg %p192
      %p199 = scmp.eq.s32.totalorder %s31, 63
      %p200 = por %p198, %p199
      %p201 = scmp.ne.s32.totalorder %s193, %s196
      %p202 = scmp.eq.s32.totalorder %s31, 0
      %p203 = por %p201, %p202
      %p204 = scmp.ne.s32.totalorder %s193, %s196
      %p205 = scmp.eq.s32.totalorder %s36, 63
      %p206 = por %p204, %p205
      %p207 = scmp.ne.s32.totalorder %s196, %s197
      %p208 = scmp.eq.s32.totalorder %s36, 0
      %p209 = por %p207, %p208
      %p210 = scmp.ne.s32.totalorder %s196, %s197
      %p211 = scmp.eq.s32.totalorder %s37, 63
      %p212 = por %p210, %p211
      %p214 = scmp.ne.s32.totalorder %s197, %s213
      %p215 = scmp.eq.s32.totalorder %s37, 0
      %p216 = por %p214, %p215
      %p217 = scmp.le.s32.totalorder 1, %s31
      %p218 = scmp.lt.s32.totalorder %s31, 65
      %p219 = pnand %p217, %p218
      %p220 = pneg %p219
      // Predicated region
      $region9: #{tpu_custom_call.1} parent=5 // pred_check
        _
      $region10: #{tpu_custom_call.1} parent=5 // pred_check_branch
        %222 = sbr.rel (%p219) target = $region12
      $region11: #{tpu_custom_call.1} parent=5 // pred_region
        %s223 = ssub.s32 %s31, 1
      $region12: #{tpu_custom_call.1} parent=5 // pred_fallthru
        _
      %p224 = scmp.lt.s32.totalorder %s31, 64
      // Predicated region
      $region13: #{tpu_custom_call.1} parent=5 // pred_check
        %p225 = pneg %p224
      $region14: #{tpu_custom_call.1} parent=5 // pred_check_branch
        %227 = sbr.rel (%p225) target = $region16
      $region15: #{tpu_custom_call.1} parent=5 // pred_region
        // Predicated region
        $region17: #{tpu_custom_call.1} parent=15 // pred_check
          %p228 = pneg %p75
        $region18: #{tpu_custom_call.1} parent=15 // pred_check_branch
          %230 = sbr.rel (%p228) target = $region20
        $region19: #{tpu_custom_call.1} parent=15 // pred_region
          %s231 = sld [smem:[#allocation4 + %s38]]
          %s232 = sld [smem:[#allocation5 + %s38]]
          %s233 = ssub.s32 %s232, 1
          %p234 = scmp.lt.s32.totalorder %s39, %s233
          %s235 = scalar_select %p234, %s39, %s233
          %s236 = sadd.s32 %s231, %s235
          %p237 = scmp.lt.s32.totalorder %s236, 4
          %s238 = scalar_select %p237, %s236, 4
          %s239 = scalar_lea.vmem %s2, %s238
          %s240 = sld [smem:[#allocation4 + %s38]]
          %s241 = sld [smem:[#allocation5 + %s38]]
          %s242 = ssub.s32 %s241, 1
          %p243 = scmp.lt.s32.totalorder %s39, %s242
          %s244 = scalar_select %p243, %s39, %s242
          %s245 = sadd.s32 %s240, %s244
        $region20: #{tpu_custom_call.1} parent=15 // pred_fallthru
          _
        // Predicated region
        $region21: #{tpu_custom_call.1} parent=15 // pred_check
          %p246 = pneg %p113
        $region22: #{tpu_custom_call.1} parent=15 // pred_check_branch
          %248 = sbr.rel (%p246) target = $region24
        $region23: #{tpu_custom_call.1} parent=15 // pred_region
          %s249 = sand.u32 %s103, 1
          %s250 = scalar_lea.sflag [#allocation7], %s249
          %s251 = sand.u32 %s103, 1
          %s252 = smul.addr %s251, 128
          %s253 = scalar_lea.vmem [#allocation6], %s252
          %s254 = sld [smem:[#allocation4 + %s38]]
          %s255 = sld [smem:[#allocation5 + %s38]]
          %s256 = ssub.s32 %s255, 1
          %p257 = scmp.lt.s32.totalorder %s39, %s256
          %s258 = scalar_select %p257, %s39, %s256
          %s259 = sadd.s32 %s254, %s258
          %s260 = smul.u32 16, %s259
          %s262 = ssub.s32 2048, 2048
          %263 = vsyncadd %s250, %s262
          %s264 = smul.addr %s260, 128
          %s265 = scalar_lea.hbm %s3, %s264
          %s266 = sshll.u32 %s253, 4
          %s267 = int_to_ptr.vmem [resolvable:$true] %s266
          %272 = dma.hbm_to_vmem [thread:$0]  %s265, 2048, %s267, %s250, 128, 128, 8
        $region24: #{tpu_custom_call.1} parent=15 // pred_fallthru
          _
        // Predicated region
        $region25: #{tpu_custom_call.1} parent=15 // pred_check
          %p273 = pneg %p151
        $region26: #{tpu_custom_call.1} parent=15 // pred_check_branch
          %275 = sbr.rel (%p273) target = $region28
        $region27: #{tpu_custom_call.1} parent=15 // pred_region
          %s276 = sand.u32 %s141, 1
          %s277 = scalar_lea.sflag [#allocation10], %s276
          %s278 = sand.u32 %s141, 1
          %s279 = smul.addr %s278, 64
          %s280 = scalar_lea.vmem [#allocation9], %s279
          %s281 = sld [smem:[#allocation4 + %s38]]
          %s282 = sld [smem:[#allocation5 + %s38]]
          %s283 = ssub.s32 %s282, 1
          %p284 = scmp.lt.s32.totalorder %s39, %s283
          %s285 = scalar_select %p284, %s39, %s283
          %s286 = sadd.s32 %s281, %s285
          %s287 = smul.u32 16, %s286
          %s289 = ssub.s32 1024, 1024
          %290 = vsyncadd %s277, %s289
          %s291 = smul.addr %s287, 64
          %s292 = scalar_lea.hbm %s4, %s291
          %s293 = sshll.u32 %s280, 4
          %s294 = int_to_ptr.vmem [resolvable:$true] %s293
          %299 = dma.hbm_to_vmem [thread:$0]  %s292, 1024, %s294, %s277, 64, 64, 4
        $region28: #{tpu_custom_call.1} parent=15 // pred_fallthru
          _
        // Predicated region
        $region29: #{tpu_custom_call.1} parent=15 // pred_check
          %p300 = pneg %p177
        $region30: #{tpu_custom_call.1} parent=15 // pred_check_branch
          %302 = sbr.rel (%p300) target = $region32
        $region31: #{tpu_custom_call.1} parent=15 // pred_region
          %p303 = scmp.lt.s32.totalorder %s38, 31
          %s304 = scalar_select %p303, %s38, 31
          %s305 = smul.addr %s304, 8
          %s306 = scalar_lea.vmem %s5, %s305
        $region32: #{tpu_custom_call.1} parent=15 // pred_fallthru
          _
      $region16: #{tpu_custom_call.1} parent=5 // pred_fallthru
        _
      %p307 = scmp.le.s32.totalorder 1, %s31
      %p308 = scmp.lt.s32.totalorder %s31, 65
      %p309 = pnand %p307, %p308
      %p310 = pneg %p309
      // Predicated region
      $region33: #{tpu_custom_call.1} parent=5 // pred_check
        _
      $region34: #{tpu_custom_call.1} parent=5 // pred_check_branch
        %312 = sbr.rel (%p309) target = $region36
      $region35: #{tpu_custom_call.1} parent=5 // pred_region
        %s313 = ssub.s32 %s31, 1
        %s314 = sand.u32 %s106, 1
        %s315 = scalar_lea.sflag [#allocation7], %s314
        %s316 = sand.u32 %s106, 1
        %s317 = smul.addr %s316, 128
        %s318 = scalar_lea.vmem [#allocation6], %s317
        // Predicated region
        $region37: #{tpu_custom_call.1} parent=35 // pred_check
          %p319 = pneg %p119
        $region38: #{tpu_custom_call.1} parent=35 // pred_check_branch
          %321 = sbr.rel (%p319) target = $region40
        $region39: #{tpu_custom_call.1} parent=35 // pred_region
          %322 = dma.done %s315, 2048
        $region40: #{tpu_custom_call.1} parent=35 // pred_fallthru
          _
        %s323 = sand.u32 %s144, 1
        %s324 = scalar_lea.sflag [#allocation10], %s323
        %s325 = sand.u32 %s144, 1
        %s326 = smul.addr %s325, 64
        %s327 = scalar_lea.vmem [#allocation9], %s326
        // Predicated region
        $region41: #{tpu_custom_call.1} parent=35 // pred_check
          %p328 = pneg %p157
        $region42: #{tpu_custom_call.1} parent=35 // pred_check_branch
          %330 = sbr.rel (%p328) target = $region44
        $region43: #{tpu_custom_call.1} parent=35 // pred_region
          %331 = dma.done %s324, 1024
        $region44: #{tpu_custom_call.1} parent=35 // pred_fallthru
          _
        %s332 = sld [smem:[#allocation4 + %s40]]
        %s333 = sld [smem:[#allocation5 + %s40]]
        %s334 = ssub.s32 %s333, 1
        %p335 = scmp.lt.s32.totalorder %s41, %s334
        %s336 = scalar_select %p335, %s41, %s334
        %s337 = sadd.s32 %s332, %s336
        %p338 = scmp.lt.s32.totalorder %s337, 4
        %s339 = scalar_select %p338, %s337, 4
        %s340 = scalar_lea.vmem %s2, %s339
        %p341 = pneg %p81
        %p342 = pneg %p78
        %s343 = sand.u32 %s106, 1
        %s344 = scalar_lea.sflag [#allocation7], %s343
        %s345 = sand.u32 %s106, 1
        %s346 = smul.addr %s345, 128
        %s347 = scalar_lea.vmem [#allocation6], %s346
        %p348 = pneg %p119
        %p349 = pneg %p116
        %s350 = sand.u32 %s144, 1
        %s351 = scalar_lea.sflag [#allocation10], %s350
        %s352 = sand.u32 %s144, 1
        %s353 = smul.addr %s352, 64
        %s354 = scalar_lea.vmem [#allocation9], %s353
        %p355 = pneg %p157
        %p356 = pneg %p154
        %p357 = scmp.lt.s32.totalorder %s40, 31
        %s358 = scalar_select %p357, %s40, 31
        %s359 = smul.addr %s358, 8
        %s360 = scalar_lea.vmem %s5, %s359
        %p361 = pneg %p183
        %p362 = pneg %p180
        %p363 = pneg %p209
        %p364 = pneg %p206
        %s365 = sand.u32 %s196, 1
        %s366 = scalar_lea.sflag [#allocation8], %s365
        %s367 = sand.u32 %s196, 1
        %s368 = smul.addr %s367, 8
        %s369 = scalar_lea.vmem [#allocation11], %s368
        %s370 = sld [smem:[#allocation4 + %s40]]
        %s371 = sld [smem:[#allocation5 + %s40]]
        %s372 = ssub.s32 %s371, 1
        %p373 = scmp.lt.s32.totalorder %s41, %s372
        %s374 = scalar_select %p373, %s41, %s372
        %s375 = sadd.s32 %s370, %s374
        %p376 = scmp.lt.s32.totalorder %s375, 4
        %s377 = scalar_select %p376, %s375, 4
        %s378 = scalar_lea.vmem %s2, %s377
        %s379 = sld [smem:[#allocation4 + %s40]]
        %s380 = sld [smem:[#allocation5 + %s40]]
        %s381 = ssub.s32 %s380, 1
        %p382 = scmp.lt.s32.totalorder %s41, %s381
        %s383 = scalar_select %p382, %s41, %s381
        %s384 = sadd.s32 %s379, %s383
        %s385 = sld [smem:[#allocation4 + %s40]]
        %s386 = sld [smem:[#allocation5 + %s40]]
        %s387 = ssub.s32 %s386, 1
        %p388 = scmp.lt.s32.totalorder %s41, %s387
        %s389 = scalar_select %p388, %s41, %s387
        %s390 = sadd.s32 %s385, %s389
        %s391 = smul.u32 16, %s390
        %s392 = sld [smem:[#allocation4 + %s40]]
        %s393 = sld [smem:[#allocation5 + %s40]]
        %s394 = ssub.s32 %s393, 1
        %p395 = scmp.lt.s32.totalorder %s41, %s394
        %s396 = scalar_select %p395, %s41, %s394
        %s397 = sadd.s32 %s392, %s396
        %s398 = smul.u32 16, %s397
        %p399 = scmp.lt.s32.totalorder %s40, 31
        %s400 = scalar_select %p399, %s40, 31
        %s401 = smul.addr %s400, 8
        %s402 = scalar_lea.vmem %s5, %s401
        %p404 = scmp.eq.s32.totalorder %s41, 0
        // Predicated region
        $region45: #{tpu_custom_call.1} parent=35 // pred_check
          %p405 = pneg %p404
        $region46: #{tpu_custom_call.1} parent=35 // pred_check_branch
          %407 = sbr.rel (%p405) target = $region48
        $region47: #{tpu_custom_call.1} parent=35 // pred_region
          %408 = vst [vmem:[#allocation2] sm:$0xff] 0.0
        $region48: #{tpu_custom_call.1} parent=35 // pred_fallthru
          _
        %s409 = sld [smem:[#allocation5 + %s40]]
        %p410 = scmp.lt.s32.totalorder %s41, %s409
        // Predicated region
        $region49: #{tpu_custom_call.1} parent=35 // pred_check
          %p411 = pneg %p410
        $region50: #{tpu_custom_call.1} parent=35 // pred_check_branch
          %413 = sbr.rel (%p411) target = $region52
        $region51: #{tpu_custom_call.1} parent=35 // pred_region
          %v414 = vld [vmem:[%s378] sm:$0x1]
          %s415 = smul.u32 %s40, 8
          %v416 = vlaneseq
          %v417 = vshrl.u32 %v416, 7
          %v418 = vstv %s415
          %v419 = vadd.s32 %v418, %v417
          %v420 = vlaneseq
          %v421 = vshrl.u32 %v420, 7
          %v422 = vsub.s32 0, %v421
          %v423 = vrot.slane %v414, %v422
          %vm424 = vcmp.eq.s32.totalorder %v423, %v419
          %v425 = vsel %vm424, 1, 0
          %v426 = vcvt.s32.f32 %v425
          %v427 = vpack.c.bf16 %v426, %v426
          %v428 = vld [vmem:[%s318] sm:$0xff]
          %v429 = vld [vmem:[%s318 + $0x8] sm:$0xff]
          %v430 = vld [vmem:[%s318 + $0x10] sm:$0xff]
          %v431 = vld [vmem:[%s318 + $0x18] sm:$0xff]
          %v432 = vld [vmem:[%s318 + $0x20] sm:$0xff]
          %v433 = vld [vmem:[%s318 + $0x28] sm:$0xff]
          %v434 = vld [vmem:[%s318 + $0x30] sm:$0xff]
          %v435 = vld [vmem:[%s318 + $0x38] sm:$0xff]
          %v436 = vld [vmem:[%s318 + $0x40] sm:$0xff]
          %v437 = vld [vmem:[%s318 + $0x48] sm:$0xff]
          %v438 = vld [vmem:[%s318 + $0x50] sm:$0xff]
          %v439 = vld [vmem:[%s318 + $0x58] sm:$0xff]
          %v440 = vld [vmem:[%s318 + $0x60] sm:$0xff]
          %v441 = vld [vmem:[%s318 + $0x68] sm:$0xff]
          %v442 = vld [vmem:[%s318 + $0x70] sm:$0xff]
          %v443 = vld [vmem:[%s318 + $0x78] sm:$0xff]
          %v444 = vld [vmem:[%s327] sm:$0xf]
          %v445 = vld [vmem:[%s327 + $0x4] sm:$0xf]
          %v446 = vld [vmem:[%s327 + $0x8] sm:$0xf]
          %v447 = vld [vmem:[%s327 + $0xc] sm:$0xf]
          %v448 = vld [vmem:[%s327 + $0x10] sm:$0xf]
          %v449 = vld [vmem:[%s327 + $0x14] sm:$0xf]
          %v450 = vld [vmem:[%s327 + $0x18] sm:$0xf]
          %v451 = vld [vmem:[%s327 + $0x1c] sm:$0xf]
          %v452 = vld [vmem:[%s327 + $0x20] sm:$0xf]
          %v453 = vld [vmem:[%s327 + $0x24] sm:$0xf]
          %v454 = vld [vmem:[%s327 + $0x28] sm:$0xf]
          %v455 = vld [vmem:[%s327 + $0x2c] sm:$0xf]
          %v456 = vld [vmem:[%s327 + $0x30] sm:$0xf]
          %v457 = vld [vmem:[%s327 + $0x34] sm:$0xf]
          %v458 = vld [vmem:[%s327 + $0x38] sm:$0xf]
          %v459 = vld [vmem:[%s327 + $0x3c] sm:$0xf]
          %v460 = vunpack.c.l.bf16 %v444
          %v461 = vunpack.c.l.bf16 %v445
          %v462 = vunpack.c.l.bf16 %v446
          %v463 = vunpack.c.l.bf16 %v447
          %v464 = vunpack.c.l.bf16 %v448
          %v465 = vunpack.c.l.bf16 %v449
          %v466 = vunpack.c.l.bf16 %v450
          %v467 = vunpack.c.l.bf16 %v451
          %v468 = vunpack.c.l.bf16 %v452
          %v469 = vunpack.c.l.bf16 %v453
          %v470 = vunpack.c.l.bf16 %v454
          %v471 = vunpack.c.l.bf16 %v455
          %v472 = vunpack.c.l.bf16 %v456
          %v473 = vunpack.c.l.bf16 %v457
          %v474 = vunpack.c.l.bf16 %v458
          %v475 = vunpack.c.l.bf16 %v459
          %v476 = vmul.f32 %v428, %v460
          %v477 = vmul.f32 %v429, %v461
          %v478 = vmul.f32 %v430, %v462
          %v479 = vmul.f32 %v431, %v463
          %v480 = vmul.f32 %v432, %v464
          %v481 = vmul.f32 %v433, %v465
          %v482 = vmul.f32 %v434, %v466
          %v483 = vmul.f32 %v435, %v467
          %v484 = vmul.f32 %v436, %v468
          %v485 = vmul.f32 %v437, %v469
          %v486 = vmul.f32 %v438, %v470
          %v487 = vmul.f32 %v439, %v471
          %v488 = vmul.f32 %v440, %v472
          %v489 = vmul.f32 %v441, %v473
          %v490 = vmul.f32 %v442, %v474
          %v491 = vmul.f32 %v443, %v475
          %v492 = vpack.c.bf16 %v477, %v476
          %v493 = vpack.c.bf16 %v479, %v478
          %v494 = vpack.c.bf16 %v481, %v480
          %v495 = vpack.c.bf16 %v483, %v482
          %v496 = vpack.c.bf16 %v485, %v484
          %v497 = vpack.c.bf16 %v487, %v486
          %v498 = vpack.c.bf16 %v489, %v488
          %v499 = vpack.c.bf16 %v491, %v490
          %v500 = vld [vmem:[#allocation2] sm:$0xff]
          %501 = vmatprep.subr.bf16.mxu0 0
          %502 = vmatpush1.bf16.msra.mxu0 %v492
          %503 = vmatprep.subr.bf16.mxu0 0
          %504 = vmatpush1.bf16.msra.mxu0 %v493
          %505 = vmatprep.subr.bf16.mxu0 0
          %506 = vmatpush1.bf16.msra.mxu0 %v494
          %507 = vmatprep.subr.bf16.mxu0 0
          %508 = vmatpush1.bf16.msra.mxu0 %v495
          %509 = vmatprep.subr.bf16.mxu0 0
          %510 = vmatpush1.bf16.msra.mxu0 %v496
          %511 = vmatprep.subr.bf16.mxu0 0
          %512 = vmatpush1.bf16.msra.mxu0 %v497
          %513 = vmatprep.subr.bf16.mxu0 0
          %514 = vmatpush1.bf16.msra.mxu0 %v498
          %515 = vmatprep.subr.bf16.mxu0 0
          %516 = vmatpush1.bf16.msra.mxu0 %v499
          %517 = vmatprep.subr.bf16.mxu0 0
          %518 = vmatpush1.bf16.msra.mxu0 0
          %519 = vmatprep.subr.bf16.mxu0 0
          %520 = vmatpush1.bf16.msra.mxu0 0
          %521 = vmatprep.subr.bf16.mxu0 0
          %522 = vmatpush1.bf16.msra.mxu0 0
          %523 = vmatprep.subr.bf16.mxu0 0
          %524 = vmatpush1.bf16.msra.mxu0 0
          %525 = vmatprep.subr.bf16.mxu0 0
          %526 = vmatpush1.bf16.msra.mxu0 0
          %527 = vmatprep.subr.bf16.mxu0 0
          %528 = vmatpush1.bf16.msra.mxu0 0
          %529 = vmatprep.subr.bf16.mxu0 0
          %530 = vmatpush1.bf16.msra.mxu0 0
          %531 = vmatprep.subr.bf16.mxu0 0
          %532 = vmatpush1.bf16.msra.mxu0 0
          %533 = vmatprep.mubr.bf16.mxu0 0
          %534 = vmatmul.mubr.bf16.gmra.mrb[0].mxu0 %v427
          %v535 = vpop.f32.mrb[0].mxu0
          %v536 = vadd.f32 0.0, %v535
          %v537 = vpop.f32.mrb[0].mxu0
          %v538 = vpop.f32.mrb[0].mxu0
          %v539 = vpop.f32.mrb[0].mxu0
          %540 = vdwg.mxu0
          %v541 = vadd.f32 %v500, %v536
          %542 = vst [vmem:[#allocation2] sm:$0xff] %v541
        $region52: #{tpu_custom_call.1} parent=35 // pred_fallthru
          _
        %p543 = scmp.eq.s32.totalorder %s41, 1
        // Predicated region
        $region53: #{tpu_custom_call.1} parent=35 // pred_check
          %p544 = pneg %p543
        $region54: #{tpu_custom_call.1} parent=35 // pred_check_branch
          %546 = sbr.rel (%p544) target = $region56
        $region55: #{tpu_custom_call.1} parent=35 // pred_region
          %v547 = vld [vmem:[#allocation2] sm:$0xff]
          %v548 = vld [vmem:[%s402] sm:$0xff]
          %550 = vset.pattern.permute.xlu0 0
          %551 = vperm.xlu0 %550, %v548
          %v552 = vpop.permute.xlu0 %551
          %v554 = vmul.f32 %v547, %v552
          %v555 = vmul.f32 %v554, %v554
          %556 = vadd.xlane.f32.xlu0 %v555
          %v557 = vpop.xlane.xlu0 %556
          %v558 = vmax.f32 %v557, 1e-24
          %v559 = vrsqrt.pop %v558
          %v560 = vmul.f32 %v554, %v559
          %561 = vst [vmem:[%s369] sm:$0xff] %v560
        $region56: #{tpu_custom_call.1} parent=35 // pred_fallthru
          _
        %s562 = sand.u32 %s196, 1
        %s563 = scalar_lea.sflag [#allocation8], %s562
        %s564 = sand.u32 %s196, 1
        %s565 = smul.addr %s564, 8
        %s566 = scalar_lea.vmem [#allocation11], %s565
        // Predicated region
        $region57: #{tpu_custom_call.1} parent=35 // pred_check
          %p567 = pneg %p206
        $region58: #{tpu_custom_call.1} parent=35 // pred_check_branch
          %569 = sbr.rel (%p567) target = $region60
        $region59: #{tpu_custom_call.1} parent=35 // pred_region
          %s571 = ssub.s32 128, 128
          %572 = vsyncadd %s563, %s571
          %s573 = smul.addr %s40, 128
          %s574 = scalar_lea.hbm %s6, %s573
          %s576 = sshll.u32 %s566, 4
          %s577 = int_to_ptr.vmem [resolvable:$true] %s576
          %579 = dma.vmem_to_hbm [thread:$0]  %s577, 128, %s574, %s563
        $region60: #{tpu_custom_call.1} parent=35 // pred_fallthru
          _
      $region36: #{tpu_custom_call.1} parent=5 // pred_fallthru
        _
      %p580 = scmp.le.s32.totalorder 2, %s31
      // Predicated region
      $region61: #{tpu_custom_call.1} parent=5 // pred_check
        %p581 = pneg %p580
      $region62: #{tpu_custom_call.1} parent=5 // pred_check_branch
        %583 = sbr.rel (%p581) target = $region64
      $region63: #{tpu_custom_call.1} parent=5 // pred_region
        %s584 = ssub.s32 %s31, 2
        // Predicated region
        $region65: #{tpu_custom_call.1} parent=63 // pred_check
          %p585 = pneg %p212
        $region66: #{tpu_custom_call.1} parent=63 // pred_check_branch
          %587 = sbr.rel (%p585) target = $region68
        $region67: #{tpu_custom_call.1} parent=63 // pred_region
          %s588 = sand.u32 %s197, 1
          %s589 = scalar_lea.sflag [#allocation8], %s588
          %s590 = sand.u32 %s197, 1
          %s591 = smul.addr %s590, 8
          %s592 = scalar_lea.vmem [#allocation11], %s591
          %593 = dma.done %s589, 128
        $region68: #{tpu_custom_call.1} parent=63 // pred_fallthru
          _
      $region64: #{tpu_custom_call.1} parent=5 // pred_fallthru
        _
    $region6: #{tpu_custom_call.1} parent=1 // loop_footer
      %s35 = sadd.s32 1, %s31
    $region7: #{tpu_custom_call.1} parent=1 // loop_footer_branch
      %30 = sbr.rel target = $region3
    $region8: #{tpu_custom_call.1} parent=1 // loop_exit
      _
    %594 = vsyncpa [#allocation7], 1
    %s595 = scalar_lea.sflag [#allocation7], 1
    %596 = vsyncpa %s595, 1
    %597 = vsyncpa [#allocation10], 1
    %s598 = scalar_lea.sflag [#allocation10], 1
    %599 = vsyncpa %s598, 1
    %600 = vsyncpa [#allocation8], 1
    %s601 = scalar_lea.sflag [#allocation8], 1
    %602 = vsyncpa %s601, 1

</llo_original>
